<compile_context>
chip_gen: v6e
topology: v6e:2x2x1
jax: 0.10.0
libtpu: 0.0.40
codegen_flags: <defaults>
</compile_context>

<pallas_src>
import functools

import jax
import jax.numpy as jnp
from jax.experimental import pallas as pl
from jax.experimental.pallas import tpu as pltpu


def _focal_loss_kernel(x_ref, t_ref, o_ref, *, gamma):
    i = pl.program_id(0)

    @pl.when(i == 0)
    def _():
        o_ref[...] = jnp.zeros_like(o_ref)

    x = x_ref[...].astype(jnp.float32)
    t = t_ref[...].astype(jnp.float32)

    # Stable log-sigmoid path (3 EUP ops/elem: exp, log, div).
    #   log(sigmoid(x))     = -softplus(-x)
    #   log(1 - sigmoid(x)) = log(sigmoid(x)) - x
    e = jnp.exp(-jnp.abs(x))
    log1p_e = jnp.log(1.0 + e)
    log_s = jnp.where(x >= 0.0, 0.0, x) - log1p_e        # log(sigmoid(x))
    log_1ms = log_s - x                                   # log(1 - sigmoid(x))

    r = 1.0 / (1.0 + e)
    s = jnp.where(x >= 0.0, r, e * r)                     # sigmoid(x)
    one_m_s = jnp.where(x >= 0.0, e * r, r)               # sigmoid(-x) == 1 - s

    # gamma is a static Python number: integer gamma -> pure VPU multiplies.
    if gamma == 2:
        w_pos = one_m_s * one_m_s
        w_neg = s * s
    else:
        w_pos = one_m_s ** gamma
        w_neg = s ** gamma

    loss = -t * w_pos * log_s - (1.0 - t) * w_neg * log_1ms

    # Fold (block_b, C) -> (8, C): layout-preserving split of the sublane-major
    # batch axis followed by elementwise (VPU) adds. The output block is the
    # full (8, C) array and its index_map is constant, so it stays resident in
    # VMEM across the whole reduction grid.
    bb, cc = loss.shape
    o_ref[...] += jnp.sum(loss.reshape(bb // 8, 8, cc), axis=0)


def focal_loss_multilabel(inputs, targets, gamma=2,
                          vmem_input_budget_bytes=8 * 1024 * 1024):
    """Pallas TPU implementation of FocalLossMultiLabel.forward (mean reduction)."""
    assert inputs.shape == targets.shape
    if inputs.ndim != 2:  # loss is a plain elementwise mean -> flatten to 2D
        inputs = inputs.reshape(-1, inputs.shape[-1])
        targets = targets.reshape(-1, targets.shape[-1])
    B, C = inputs.shape
    total_elems = B * C

    # Lane-pad classes to a multiple of 128.
    C_pad = max(128, ((C + 127) // 128) * 128)

    # Pick the largest batch tile such that 2 operands x 2 pipeline buffers fit
    # the VMEM budget (default budget ~8 MiB -> safe on v5e/v6e/v7x defaults).
    row_bytes = C_pad * (jnp.dtype(inputs.dtype).itemsize
                         + jnp.dtype(targets.dtype).itemsize)
    block_b = vmem_input_budget_bytes // (2 * row_bytes)
    block_b = max(8, (block_b // 8) * 8)
    B_min = ((B + 7) // 8) * 8
    block_b = min(block_b, B_min)
    B_pad = ((B + block_b - 1) // block_b) * block_b
    num_tiles = B_pad // block_b

    pad_b = B_pad - B
    pad_c = C_pad - C
    if pad_b or pad_c:
        # logit=+40, target=1  =>  both focal terms are exactly 0 for padding.
        x = jnp.pad(inputs, ((0, pad_b), (0, pad_c)), constant_values=40.0)
        t = jnp.pad(targets, ((0, pad_b), (0, pad_c)), constant_values=1)
    else:
        x, t = inputs, targets

    partial = pl.pallas_call(
        functools.partial(_focal_loss_kernel, gamma=gamma),
        out_shape=jax.ShapeDtypeStruct((8, C_pad), jnp.float32),
        grid_spec=pltpu.PrefetchScalarGridSpec(
            num_scalar_prefetch=0,
            grid=(num_tiles,),
            in_specs=[
                pl.BlockSpec((block_b, C_pad), lambda i: (i, 0)),
                pl.BlockSpec((block_b, C_pad), lambda i: (i, 0)),
            ],
            out_specs=pl.BlockSpec((8, C_pad), lambda i: (0, 0)),
        ),
        compiler_params=pltpu.CompilerParams(
            dimension_semantics=("arbitrary",),  # reduction over batch tiles
        ),
    )(x, t)

    # Final (tiny) cross-lane/sublane reduction + mean in plain JAX.
    return jnp.sum(partial) / jnp.float32(total_elems)


def _reference(inputs, targets, gamma=2):
    x = inputs.astype(jnp.float32)
    t = targets.astype(jnp.float32)
    s = jax.nn.sigmoid(x)
    pos = -t * (1.0 - s) ** gamma * jnp.log(s + 1e-10)
    neg = -(1.0 - t) * s ** gamma * jnp.log(1.0 - s + 1e-10)
    return jnp.mean(pos + neg)


if __name__ == "__main__":
    key = jax.random.PRNGKey(0)
    k1, k2, k3, k4 = jax.random.split(key, 4)

    # Test 1: aligned f32 multi-label problem (16 samples x 256 classes).
    B, C = 16, 256
    x_f32 = jax.random.normal(k1, (B, C), dtype=jnp.float32)
    t_f32 = (jax.random.uniform(k2, (B, C)) > 0.5).astype(jnp.float32)

    loss1 = jax.block_until_ready(focal_loss_multilabel(x_f32, t_f32, gamma=2))
    ref1 = _reference(x_f32, t_f32, gamma=2)
    assert jnp.allclose(loss1, ref1, rtol=1e-4, atol=1e-5), (loss1, ref1)

    # Test 2: unaligned shape + narrow dtypes (bf16 logits / bf16 targets).
    B2, C2 = 10, 200
    x_bf16 = jax.random.normal(k3, (B2, C2), dtype=jnp.float32).astype(jnp.bfloat16)
    t_bf16 = (jax.random.uniform(k4, (B2, C2)) > 0.5).astype(jnp.bfloat16)

    loss2 = jax.block_until_ready(focal_loss_multilabel(x_bf16, t_bf16, gamma=2))
    ref2 = _reference(x_bf16, t_bf16, gamma=2)
    assert jnp.allclose(loss2, ref2, rtol=1e-4, atol=1e-5), (loss2, ref2)

    print("KERNEL_OK")
</pallas_src>

<mosaic_0001>
module attributes {stable_mosaic.version = 11 : i64} {
  func.func @_focal_loss_kernel(%arg0: i32, %arg1: memref<16x256xf32, #tpu.memory_space<vmem>>, %arg2: memref<16x256xf32, #tpu.memory_space<vmem>>, %arg3: memref<8x256xf32, #tpu.memory_space<vmem>>) attributes {dimension_semantics = [#tpu.dimension_semantics<arbitrary>], iteration_bounds = array<i64: 1>, scalar_prefetch = 0 : i64, scratch_operands = 0 : i64, tpu.core_type = #tpu.core_type<tc>, window_params = [{transform_indices = @transform_0, window_bounds = array<i64: 16, 256>}, {transform_indices = @transform_1, window_bounds = array<i64: 16, 256>}, {pipeline_mode = #tpu.pipeline_mode<synchronous>, transform_indices = @transform_2, window_bounds = array<i64: 8, 256>}]} {
    %c0_i32 = arith.constant 0 : i32
    %0 = arith.cmpi eq, %arg0, %c0_i32 : i32
    %1 = arith.extui %0 : i1 to i32
    %c0_i32_0 = arith.constant 0 : i32
    %2 = arith.cmpi ne, %1, %c0_i32_0 : i32
    scf.if %2 {
      %cst_18 = arith.constant 0.000000e+00 : f32
      %46 = vector.broadcast %cst_18 : f32 to vector<8x256xf32>
      %c0_19 = arith.constant 0 : index
      %c0_20 = arith.constant 0 : index
      %47 = vector.load %arg3[%c0_19, %c0_20] : memref<8x256xf32, #tpu.memory_space<vmem>>, vector<8x256xf32>
      tpu.vector_store %arg3[%c0_19, %c0_20], %46 {strides = array<i32>} : memref<8x256xf32, #tpu.memory_space<vmem>>, vector<8x256xf32>,
    } else {
    }
    %c0 = arith.constant 0 : index
    %c0_1 = arith.constant 0 : index
    %3 = vector.load %arg1[%c0, %c0_1] : memref<16x256xf32, #tpu.memory_space<vmem>>, vector<16x256xf32>
    %c0_2 = arith.constant 0 : index
    %c0_3 = arith.constant 0 : index
    %4 = vector.load %arg2[%c0_2, %c0_3] : memref<16x256xf32, #tpu.memory_space<vmem>>, vector<16x256xf32>
    %5 = math.absf %3 : vector<16x256xf32>
    %cst = arith.constant 0.000000e+00 : f32
    %6 = vector.broadcast %cst : f32 to vector<16x256xf32>
    %7 = arith.subf %6, %5 : vector<16x256xf32>
    %8 = math.exp %7 : vector<16x256xf32>
    %cst_4 = arith.constant 1.000000e+00 : f32
    %9 = vector.broadcast %cst_4 : f32 to vector<16x256xf32>
    %10 = arith.addf %9, %8 : vector<16x256xf32>
    %11 = math.log %10 : vector<16x256xf32>
    %cst_5 = arith.constant 0.000000e+00 : f32
    %12 = vector.broadcast %cst_5 : f32 to vector<16x256xf32>
    %13 = arith.cmpf oge, %3, %12 : vector<16x256xf32>
    %cst_6 = arith.constant 0.000000e+00 : f32
    %14 = vector.broadcast %cst_6 : f32 to vector<16x256xf32>
    %15 = arith.select %13, %14, %3 : vector<16x256xi1>, vector<16x256xf32>
    %16 = arith.subf %15, %11 : vector<16x256xf32>
    %17 = arith.subf %16, %3 : vector<16x256xf32>
    %cst_7 = arith.constant 1.000000e+00 : f32
    %18 = vector.broadcast %cst_7 : f32 to vector<16x256xf32>
    %19 = arith.addf %18, %8 : vector<16x256xf32>
    %cst_8 = arith.constant 1.000000e+00 : f32
    %20 = vector.broadcast %cst_8 : f32 to vector<16x256xf32>
    %21 = arith.divf %20, %19 : vector<16x256xf32>
    %cst_9 = arith.constant 0.000000e+00 : f32
    %22 = vector.broadcast %cst_9 : f32 to vector<16x256xf32>
    %23 = arith.cmpf oge, %3, %22 : vector<16x256xf32>
    %24 = arith.mulf %8, %21 : vector<16x256xf32>
    %25 = arith.select %23, %21, %24 : vector<16x256xi1>, vector<16x256xf32>
    %cst_10 = arith.constant 0.000000e+00 : f32
    %26 = vector.broadcast %cst_10 : f32 to vector<16x256xf32>
    %27 = arith.cmpf oge, %3, %26 : vector<16x256xf32>
    %28 = arith.mulf %8, %21 : vector<16x256xf32>
    %29 = arith.select %27, %28, %21 : vector<16x256xi1>, vector<16x256xf32>
    %30 = arith.mulf %29, %29 : vector<16x256xf32>
    %31 = arith.mulf %25, %25 : vector<16x256xf32>
    %cst_11 = arith.constant 0.000000e+00 : f32
    %32 = vector.broadcast %cst_11 : f32 to vector<16x256xf32>
    %33 = arith.subf %32, %4 : vector<16x256xf32>
    %34 = arith.mulf %33, %30 : vector<16x256xf32>
    %35 = arith.mulf %34, %16 : vector<16x256xf32>
    %cst_12 = arith.constant 1.000000e+00 : f32
    %36 = vector.broadcast %cst_12 : f32 to vector<16x256xf32>
    %37 = arith.subf %36, %4 : vector<16x256xf32>
    %38 = arith.mulf %37, %31 : vector<16x256xf32>
    %39 = arith.mulf %38, %17 : vector<16x256xf32>
    %40 = arith.subf %35, %39 : vector<16x256xf32>
    %c0_13 = arith.constant 0 : index
    %c0_14 = arith.constant 0 : index
    %41 = vector.load %arg3[%c0_13, %c0_14] : memref<8x256xf32, #tpu.memory_space<vmem>>, vector<8x256xf32>
    %42 = vector.shape_cast %40 : vector<16x256xf32> to vector<2x8x256xf32>
    %cst_15 = arith.constant dense<0.000000e+00> : vector<8x256xf32>
    %43 = vector.multi_reduction <add>, %42, %cst_15 [0] : vector<2x8x256xf32> to vector<8x256xf32>
    %44 = arith.addf %41, %43 : vector<8x256xf32>
    %c0_16 = arith.constant 0 : index
    %c0_17 = arith.constant 0 : index
    %45 = vector.load %arg3[%c0_16, %c0_17] : memref<8x256xf32, #tpu.memory_space<vmem>>, vector<8x256xf32>
    tpu.vector_store %arg3[%c0_16, %c0_17], %44 {strides = array<i32>} : memref<8x256xf32, #tpu.memory_space<vmem>>, vector<8x256xf32>,
    return
  }
  func.func @transform_0(%arg0: i32) -> (i32, i32) {
    %c0_i32 = arith.constant 0 : i32
    %c0_i32_0 = arith.constant 0 : i32
    return %arg0, %c0_i32 : i32, i32
  }
  func.func @transform_1(%arg0: i32) -> (i32, i32) {
    %c0_i32 = arith.constant 0 : i32
    %c0_i32_0 = arith.constant 0 : i32
    return %arg0, %c0_i32 : i32, i32
  }
  func.func @transform_2(%arg0: i32) -> (i32, i32) {
    %c0_i32 = arith.constant 0 : i32
    %c0_i32_0 = arith.constant 0 : i32
    %c0_i32_1 = arith.constant 0 : i32
    return %c0_i32, %c0_i32_0 : i32, i32
  }
}

</mosaic_0001>

<llo_original>
// kernel: tpu_custom_call.1
$region0: #{tpu_custom_call.1}
  #allocation0 [shape = 'u32[]', space=smem, size = 0x4, offset = 0x4, fixed_abs, tag = 'smem constant byte address 0x4 - core index']
  #allocation1 [shape = 'u32[144,128]{1,0:T(1,128)}', space=vmem, size = 0x12000, scoped, tag = 'internal scratch']
  %s0 = inlined_call_operand.hbm [shape: f32[16,256], index: 0, kind: input, shape index: {}]
  %s1 = inlined_call_operand.hbm [shape: f32[16,256], index: 1, kind: input, shape index: {}]
  %s2 = inlined_call_operand.hbm [shape: f32[8,256], index: 2, kind: output, shape index: {}]
  %s3 = sld [smem:[#allocation0]]
  $region30: #{tpu_custom_call.1} parent=0
    _
  %s5 = ssub.s32 1, %s3
  %s6 = scalar_select 0, %s5, %s3
  $region1: #{tpu_custom_call.1} parent=0
    #allocation2 [shape = 'u8[16384]{0}', space=vmem, size = 0x4000, scoped, tag = 'input window, operand 0, single buffered']
    #allocation3 [shape = 's32[1]{0}', space=sflag, size = 0x4, scoped, tag = 'scoped memory for tpu_custom_call.1']
    #allocation4 [shape = 's32[1]{0}', space=sflag, size = 0x4, scoped, tag = 'scoped memory for tpu_custom_call.1']
    #allocation5 [shape = 'u8[16384]{0}', space=vmem, size = 0x4000, scoped, tag = 'input window, operand 1, single buffered']
    #allocation6 [shape = 's32[1]{0}', space=sflag, size = 0x4, scoped, tag = 'scoped memory for tpu_custom_call.1']
    #allocation7 [shape = 'u8[8192]{0}', space=vmem, size = 0x2000, scoped, tag = 'output window, operand 0, single buffered']
    %7 = vsyncpa [#allocation3], 0
    %8 = vsyncpa [#allocation6], 0
    %9 = vsyncpa [#allocation4], 0
    // Predicated region
    $region2: #{tpu_custom_call.1} parent=1 // pred_check
      _
    $region3: #{tpu_custom_call.1} parent=1 // pred_check_branch
      %11 = sbr.rel (0) target = $region5
    $region4: #{tpu_custom_call.1} parent=1 // pred_region
      %s13 = ssub.s32 512, 512
      %14 = vsyncadd [#allocation3], %s13
      %s15 = sshll.u32 [#allocation2], 4
      %s16 = int_to_ptr.vmem [resolvable:$true] %s15
      %21 = dma.hbm_to_vmem [thread:$0]  %s0, 512, %s16, [#allocation3], 256, 256, 16
    $region5: #{tpu_custom_call.1} parent=1 // pred_fallthru
      _
    // Predicated region
    $region6: #{tpu_custom_call.1} parent=1 // pred_check
      _
    $region7: #{tpu_custom_call.1} parent=1 // pred_check_branch
      %23 = sbr.rel (0) target = $region9
    $region8: #{tpu_custom_call.1} parent=1 // pred_region
      %s25 = ssub.s32 512, 512
      %26 = vsyncadd [#allocation6], %s25
      %s27 = sshll.u32 [#allocation5], 4
      %s28 = int_to_ptr.vmem [resolvable:$true] %s27
      %33 = dma.hbm_to_vmem [thread:$0]  %s1, 512, %s28, [#allocation6], 256, 256, 16
    $region9: #{tpu_custom_call.1} parent=1 // pred_fallthru
      _
    // Predicated region
    $region10: #{tpu_custom_call.1} parent=1 // pred_check
      _
    $region11: #{tpu_custom_call.1} parent=1 // pred_check_branch
      %35 = sbr.rel (0) target = $region13
    $region12: #{tpu_custom_call.1} parent=1 // pred_region
      %36 = dma.done [#allocation3], 512
    $region13: #{tpu_custom_call.1} parent=1 // pred_fallthru
      _
    // Predicated region
    $region14: #{tpu_custom_call.1} parent=1 // pred_check
      _
    $region15: #{tpu_custom_call.1} parent=1 // pred_check_branch
      %38 = sbr.rel (0) target = $region17
    $region16: #{tpu_custom_call.1} parent=1 // pred_region
      %39 = dma.done [#allocation6], 512
    $region17: #{tpu_custom_call.1} parent=1 // pred_fallthru
      _
    %p40 = scmp.eq.s32.totalorder 0, 0
    // Predicated region
    $region18: #{tpu_custom_call.1} parent=1 // pred_check
      %p41 = pneg %p40
    $region19: #{tpu_custom_call.1} parent=1 // pred_check_branch
      %43 = sbr.rel (%p41) target = $region21
    $region20: #{tpu_custom_call.1} parent=1 // pred_region
      %44 = vst [vmem:[#allocation7] sm:$0xff] 0.0
      %45 = vst [vmem:[#allocation7 + $0x8] sm:$0xff] 0.0
    $region21: #{tpu_custom_call.1} parent=1 // pred_fallthru
      _
    %v46 = vld [vmem:[#allocation2] sm:$0xff]
    %v47 = vld [vmem:[#allocation2 + $0x8] sm:$0xff]
    %v48 = vld [vmem:[#allocation2 + $0x10] sm:$0xff]
    %v49 = vld [vmem:[#allocation2 + $0x18] sm:$0xff]
    %v50 = vld [vmem:[#allocation5] sm:$0xff]
    %v51 = vld [vmem:[#allocation5 + $0x8] sm:$0xff]
    %v52 = vld [vmem:[#allocation5 + $0x10] sm:$0xff]
    %v53 = vld [vmem:[#allocation5 + $0x18] sm:$0xff]
    %v54 = vand.u32 2147483647, %v46
    %v55 = vand.u32 2147483647, %v47
    %v56 = vand.u32 2147483647, %v48
    %v57 = vand.u32 2147483647, %v49
    %v58 = vsub.f32 0.0, %v54
    %v59 = vsub.f32 0.0, %v55
    %v60 = vsub.f32 0.0, %v56
    %v61 = vsub.f32 0.0, %v57
    %v62 = vmul.f32 %v58, 1.442695
    %v63 = vpow.pop %v62
    %v64 = vmul.f32 %v59, 1.442695
    %v65 = vpow.pop %v64
    %v66 = vmul.f32 %v60, 1.442695
    %v67 = vpow.pop %v66
    %v68 = vmul.f32 %v61, 1.442695
    %v69 = vpow.pop %v68
    %v70 = vadd.f32 %v63, 1.0
    %v71 = vadd.f32 %v65, 1.0
    %v72 = vadd.f32 %v67, 1.0
    %v73 = vadd.f32 %v69, 1.0
    %v74 = vlog2.pop %v70
    %v75 = vmul.f32 %v74, 0.6931472
    %v76 = vlog2.pop %v71
    %v77 = vmul.f32 %v76, 0.6931472
    %v78 = vlog2.pop %v72
    %v79 = vmul.f32 %v78, 0.6931472
    %v80 = vlog2.pop %v73
    %v81 = vmul.f32 %v80, 0.6931472
    %vm82 = vcmp.ge.f32.partialorder %v46, 0.0
    %vm83 = vcmp.ge.f32.partialorder %v47, 0.0
    %vm84 = vcmp.ge.f32.partialorder %v48, 0.0
    %vm85 = vcmp.ge.f32.partialorder %v49, 0.0
    %v86 = vsel %vm82, 0.0, %v46
    %v87 = vsel %vm83, 0.0, %v47
    %v88 = vsel %vm84, 0.0, %v48
    %v89 = vsel %vm85, 0.0, %v49
    %v90 = vsub.f32 %v86, %v75
    %v91 = vsub.f32 %v87, %v77
    %v92 = vsub.f32 %v88, %v79
    %v93 = vsub.f32 %v89, %v81
    %v94 = vsub.f32 %v90, %v46
    %v95 = vsub.f32 %v91, %v47
    %v96 = vsub.f32 %v92, %v48
    %v97 = vsub.f32 %v93, %v49
    %v98 = vrcp.pop %v70
    %v99 = vmul.f32 1.0, %v98
    %v100 = vrcp.pop %v71
    %v101 = vmul.f32 1.0, %v100
    %v102 = vrcp.pop %v72
    %v103 = vmul.f32 1.0, %v102
    %v104 = vrcp.pop %v73
    %v105 = vmul.f32 1.0, %v104
    %v106 = vmul.f32 %v63, %v99
    %v107 = vmul.f32 %v65, %v101
    %v108 = vmul.f32 %v67, %v103
    %v109 = vmul.f32 %v69, %v105
    %v110 = vsel %vm82, %v99, %v106
    %v111 = vsel %vm83, %v101, %v107
    %v112 = vsel %vm84, %v103, %v108
    %v113 = vsel %vm85, %v105, %v109
    %v114 = vsel %vm82, %v106, %v99
    %v115 = vsel %vm83, %v107, %v101
    %v116 = vsel %vm84, %v108, %v103
    %v117 = vsel %vm85, %v109, %v105
    %v118 = vmul.f32 %v114, %v114
    %v119 = vmul.f32 %v115, %v115
    %v120 = vmul.f32 %v116, %v116
    %v121 = vmul.f32 %v117, %v117
    %v122 = vmul.f32 %v110, %v110
    %v123 = vmul.f32 %v111, %v111
    %v124 = vmul.f32 %v112, %v112
    %v125 = vmul.f32 %v113, %v113
    %v126 = vsub.f32 0.0, %v50
    %v127 = vsub.f32 0.0, %v51
    %v128 = vsub.f32 0.0, %v52
    %v129 = vsub.f32 0.0, %v53
    %v130 = vmul.f32 %v126, %v118
    %v131 = vmul.f32 %v127, %v119
    %v132 = vmul.f32 %v128, %v120
    %v133 = vmul.f32 %v129, %v121
    %v134 = vmul.f32 %v130, %v90
    %v135 = vmul.f32 %v131, %v91
    %v136 = vmul.f32 %v132, %v92
    %v137 = vmul.f32 %v133, %v93
    %v138 = vsub.f32 1.0, %v50
    %v139 = vsub.f32 1.0, %v51
    %v140 = vsub.f32 1.0, %v52
    %v141 = vsub.f32 1.0, %v53
    %v142 = vmul.f32 %v138, %v122
    %v143 = vmul.f32 %v139, %v123
    %v144 = vmul.f32 %v140, %v124
    %v145 = vmul.f32 %v141, %v125
    %v146 = vmul.f32 %v142, %v94
    %v147 = vmul.f32 %v143, %v95
    %v148 = vmul.f32 %v144, %v96
    %v149 = vmul.f32 %v145, %v97
    %v150 = vsub.f32 %v134, %v146
    %v151 = vsub.f32 %v135, %v147
    %v152 = vsub.f32 %v136, %v148
    %v153 = vsub.f32 %v137, %v149
    %v154 = vld [vmem:[#allocation7] sm:$0xff]
    %v155 = vld [vmem:[#allocation7 + $0x8] sm:$0xff]
    %v156 = vadd.f32 %v150, %v152
    %v157 = vadd.f32 %v151, %v153
    %v158 = vadd.f32 %v154, %v156
    %v159 = vadd.f32 %v155, %v157
    %160 = vst [vmem:[#allocation7] sm:$0xff] %v158
    %161 = vst [vmem:[#allocation7 + $0x8] sm:$0xff] %v159
    // Predicated region
    $region22: #{tpu_custom_call.1} parent=1 // pred_check
      _
    $region23: #{tpu_custom_call.1} parent=1 // pred_check_branch
      %163 = sbr.rel (0) target = $region25
    $region24: #{tpu_custom_call.1} parent=1 // pred_region
      %s165 = ssub.s32 256, 256
      %166 = vsyncadd [#allocation4], %s165
      %s168 = sshll.u32 [#allocation7], 4
      %s169 = int_to_ptr.vmem [resolvable:$true] %s168
      %171 = dma.vmem_to_hbm [thread:$0]  %s169, 256, %s2, [#allocation4]
    $region25: #{tpu_custom_call.1} parent=1 // pred_fallthru
      _
    // Predicated region
    $region26: #{tpu_custom_call.1} parent=1 // pred_check
      _
    $region27: #{tpu_custom_call.1} parent=1 // pred_check_branch
      %173 = sbr.rel (0) target = $region29
    $region28: #{tpu_custom_call.1} parent=1 // pred_region
      %174 = dma.done [#allocation4], 256
    $region29: #{tpu_custom_call.1} parent=1 // pred_fallthru
      _
    %175 = vsyncpa [#allocation3], 1
    %176 = vsyncpa [#allocation6], 1
    %177 = vsyncpa [#allocation4], 1

</llo_original>
